<compile_context>
chip_gen: v5e
topology: v5e:2x2
jax: 0.10.0
libtpu: 0.0.40
codegen_flags: <defaults>
</compile_context>

<pallas_src>
import jax
import jax.numpy as jnp
from jax.experimental import pallas as pl
from jax.experimental.pallas import tpu as pltpu


def _round_up(x, m):
    return ((x + m - 1) // m) * m


def _per_row_vmem_bytes(c, itemsize, has_alpha):
    """Conservative VMEM bytes per batch row for the tile working set."""
    col_bytes = 128 * 4  # a (tile_n, 1) int32/f32 block lane-pads to 128 lanes
    # 2x targets buffers (+2x alpha_t buffers) + ~6 per-row f32 intermediates
    n_cols = 2 + (2 if has_alpha else 0) + 6
    # 2x double-buffered logits tile + ~3 f32 (tile_n, C) temporaries
    return 2 * c * itemsize + 3 * c * 4 + n_cols * col_bytes


def _make_focal_kernel(gamma, n_valid, tile_n, has_alpha):
    gamma = float(gamma)
    int_gamma = int(gamma) if (0.0 <= gamma <= 8.0 and gamma == int(gamma)) else None

    def body(logits_ref, targets_ref, alpha_t_ref, out_ref):
        # logits_ref : (tile_n, C) float (any), cast to f32 in-kernel
        # targets_ref: (tile_n, 1) int32 class indices
        # alpha_t_ref: (tile_n, 1) f32 per-sample weight alpha[target] (optional)
        # out_ref    : (1, 1) f32 in SMEM -- partial focal-loss sum for this tile
        logits = logits_ref[...].astype(jnp.float32)
        tgt = targets_ref[...]                                        # (tile_n, 1)

        # numerically stable log-softmax pieces (full logp never materialized)
        m = jnp.max(logits, axis=-1, keepdims=True)                   # (tile_n, 1)
        shifted = logits - m                                          # (tile_n, C)
        lse = jnp.log(jnp.sum(jnp.exp(shifted), axis=-1, keepdims=True))

        # fused one-hot gather: select instead of cmp+cast+mul (saves VPU work)
        cls = jax.lax.broadcasted_iota(jnp.int32, logits.shape, 1)    # (tile_n, C)
        logp_t = jnp.sum(jnp.where(cls == tgt, shifted, 0.0),
                         axis=-1, keepdims=True) - lse                # (tile_n, 1)

        if has_alpha:
            # per-sample weight gathered in the wrapper; matches
            # F.cross_entropy(..., weight=alpha, reduction='none')
            ce = -alpha_t_ref[...] * logp_t
        else:
            ce = -logp_t

        # focal modulation; integer gamma avoids the pow -> exp/log EUP path
        pt = jnp.exp(-ce)
        w = 1.0 - pt
        if int_gamma is not None:
            f = jnp.ones_like(w)
            for _ in range(int_gamma):
                f = f * w
        else:
            f = w ** gamma
        focal = f * ce                                                # (tile_n, 1)

        # mask rows past the true batch size: the last grid block may be
        # partial (no wrapper-side padding), so its tail rows hold stale VMEM
        # garbage -> must use a select, not a multiply, to stay NaN/Inf safe.
        row = pl.program_id(0) * tile_n + jax.lax.broadcasted_iota(
            jnp.int32, (tile_n, 1), 0)
        out_ref[0, 0] = jnp.sum(jnp.where(row < n_valid, focal, 0.0))

    if has_alpha:
        def kernel(logits_ref, targets_ref, alpha_t_ref, out_ref):
            body(logits_ref, targets_ref, alpha_t_ref, out_ref)
    else:
        def kernel(logits_ref, targets_ref, out_ref):
            body(logits_ref, targets_ref, None, out_ref)
    return kernel


def focal_loss(logits, targets, alpha=None, gamma=2.0, reduction="mean",
               tile_n=None):
    """Pallas TPU implementation of FocalLoss.forward.

    logits : [N, C] float (f32 or bf16)
    targets: [N]    integer class indices
    alpha  : optional [C] per-class weights (None -> unweighted)

    Note: with alpha, mean reduction divides by N (matches focal.mean() in the
    reference module), not by sum(alpha_t) as F.cross_entropy(mean) would.
    """
    if reduction not in ("mean", "sum"):
        # TODO(synk): reduction='none' (per-sample vector output) not wired up.
        raise NotImplementedError("only reduction in ('mean', 'sum') implemented")

    n, c = logits.shape
    itemsize = jnp.dtype(logits.dtype).itemsize
    has_alpha = alpha is not None
    per_row = _per_row_vmem_bytes(c, itemsize, has_alpha)

    if tile_n is None:
        # size the tile purely by a VMEM byte budget (~28 MiB working set,
        # comfortably under every chip's scoped VMEM once vmem_limit_bytes is
        # raised); cap rows at 32K, not 1024.
        budget = 28 * 1024 * 1024
        tile_n = max(32, budget // per_row)
        tile_n = min(tile_n, 32768)
        # v7x: keep >= 16 grid steps when N is large so both TensorCores get
        # several steps each and the double-buffer pipeline stays fed.
        if n >= 16 * 256:
            tile_n = min(tile_n, _round_up(-(-n // 16), 32))
    tile_n = int(tile_n)

    if tile_n >= n:
        # single tile covering the whole batch: block == full array dims.
        tile_n = n
    else:
        # multiple of 32 (bf16/int8 sublane packing); >= 8 for the (8,128) rule.
        step = 32 if tile_n >= 32 else 8
        tile_n = max(8, (tile_n // step) * step)
    num_tiles = pl.cdiv(n, tile_n)

    # NOTE: no jnp.pad of logits -- the ragged last block is a partial block
    # (masked in-kernel), so we never materialize a second copy of logits.
    targets2d = targets.astype(jnp.int32).reshape(n, 1)

    in_specs = [
        pl.BlockSpec((tile_n, c), lambda i: (i, 0)),   # logits tile
        pl.BlockSpec((tile_n, 1), lambda i: (i, 0)),   # targets column
    ]
    args = [logits, targets2d]
    if has_alpha:
        alpha_vec = jnp.asarray(alpha, jnp.float32)
        # tiny XLA gather over N in the wrapper; kernel gets per-sample weight.
        alpha_t = jnp.take(alpha_vec, targets.astype(jnp.int32), axis=0)
        alpha_t = alpha_t.astype(jnp.float32).reshape(n, 1)
        in_specs.append(pl.BlockSpec((tile_n, 1), lambda i: (i, 0)))
        args.append(alpha_t)

    # explicit scoped-VMEM request with headroom; <= 48 MiB stays safe on
    # v7x's 64 MiB physical VMEM (v5e/v6e have 128 MiB).
    est = tile_n * per_row
    vmem_limit = int(min(48 * 1024 * 1024,
                         max(16 * 1024 * 1024, est + est // 2)))

    partials = pl.pallas_call(
        _make_focal_kernel(float(gamma), n, tile_n, has_alpha),
        out_shape=jax.ShapeDtypeStruct((num_tiles, 1), jnp.float32),
        grid=(num_tiles,),
        in_specs=in_specs,
        out_specs=pl.BlockSpec((1, 1), lambda i: (i, 0),
                               memory_space=pltpu.SMEM),
        compiler_params=pltpu.CompilerParams(
            dimension_semantics=("parallel",),
            vmem_limit_bytes=vmem_limit),
    )(*args)

    total = jnp.sum(partials)
    if reduction == "mean":
        return total / jnp.float32(n)
    return total


def _reference_focal_loss(logits, targets, alpha=None, gamma=2.0, reduction="mean"):
    logp = jax.nn.log_softmax(logits.astype(jnp.float32), axis=-1)
    logp_t = jnp.take_along_axis(
        logp, targets[:, None].astype(jnp.int32), axis=-1)[:, 0]
    ce = -logp_t
    if alpha is not None:
        ce = ce * jnp.asarray(alpha, jnp.float32)[targets]
    pt = jnp.exp(-ce)
    focal = (1.0 - pt) ** gamma * ce
    if reduction == "mean":
        return jnp.mean(focal)
    return jnp.sum(focal)


if __name__ == "__main__":
    key = jax.random.PRNGKey(0)
    k1, k2, k3, k4, k5, k6 = jax.random.split(key, 6)

    # Test 1: small, unweighted, mean reduction (single full-array tile).
    N, C = 8, 16
    logits = jax.random.normal(k1, (N, C), dtype=jnp.float32)
    targets = jax.random.randint(k2, (N,), 0, C, dtype=jnp.int32)
    loss = jax.block_until_ready(focal_loss(logits, targets, gamma=2.0))
    ref = _reference_focal_loss(logits, targets, gamma=2.0)
    assert jnp.allclose(loss, ref, atol=1e-4, rtol=1e-4), (loss, ref)

    # Test 2: ragged batch over multiple tiles (partial last block, no pad),
    # per-class alpha (wrapper gather), sum reduction.
    N2, C2 = 20, 16
    logits2 = jax.random.normal(k3, (N2, C2), dtype=jnp.float32)
    targets2 = jax.random.randint(k4, (N2,), 0, C2, dtype=jnp.int32)
    alpha = jnp.linspace(0.5, 1.5, C2, dtype=jnp.float32)
    loss2 = jax.block_until_ready(
        focal_loss(logits2, targets2, alpha=alpha, gamma=2.0,
                   reduction="sum", tile_n=8))
    ref2 = _reference_focal_loss(logits2, targets2, alpha=alpha, gamma=2.0,
                                 reduction="sum")
    assert jnp.allclose(loss2, ref2, atol=1e-4, rtol=1e-4), (loss2, ref2)

    # Test 3: bf16 logits, auto tile sizing with the ">=16 grid steps" cap,
    # ragged last block, mean reduction.
    N3, C3 = 7000, 16
    logits3 = jax.random.normal(k5, (N3, C3), dtype=jnp.float32).astype(jnp.bfloat16)
    targets3 = jax.random.randint(k6, (N3,), 0, C3, dtype=jnp.int32)
    loss3 = jax.block_until_ready(focal_loss(logits3, targets3, gamma=2.0))
    ref3 = _reference_focal_loss(logits3, targets3, gamma=2.0)
    assert jnp.allclose(loss3, ref3, atol=2e-3, rtol=2e-3), (loss3, ref3)

    print("KERNEL_OK")
</pallas_src>

<mosaic_0001>
module attributes {stable_mosaic.version = 11 : i64} {
  func.func @kernel(%arg0: i32, %arg1: memref<8x16xf32, #tpu.memory_space<vmem>>, %arg2: memref<8x1xi32, #tpu.memory_space<vmem>>, %arg3: memref<1x1xf32, #tpu.memory_space<smem>>) attributes {dimension_semantics = [#tpu.dimension_semantics<parallel>], iteration_bounds = array<i64: 1>, scalar_prefetch = 0 : i64, scratch_operands = 0 : i64, tpu.core_type = #tpu.core_type<tc>, window_params = [{transform_indices = @transform_0, window_bounds = array<i64: 8, 16>}, {transform_indices = @transform_1, window_bounds = array<i64: 8, 1>}, {transform_indices = @transform_2, window_bounds = array<i64: 1, 1>}]} {
    %c0 = arith.constant 0 : index
    %c0_0 = arith.constant 0 : index
    %0 = vector.load %arg1[%c0, %c0_0] : memref<8x16xf32, #tpu.memory_space<vmem>>, vector<8x16xf32>
    %c0_1 = arith.constant 0 : index
    %c0_2 = arith.constant 0 : index
    %1 = vector.load %arg2[%c0_1, %c0_2] : memref<8x1xi32, #tpu.memory_space<vmem>>, vector<8x1xi32>
    %cst = arith.constant dense<0xFF800000> : vector<8xf32>
    %2 = vector.multi_reduction <maximumf>, %0, %cst [1] : vector<8x16xf32> to vector<8xf32>
    %3 = vector.shape_cast %2 : vector<8xf32> to vector<8x1xf32>
    %4 = vector.broadcast %3 : vector<8x1xf32> to vector<8x16xf32>
    %5 = arith.subf %0, %4 : vector<8x16xf32>
    %6 = math.exp %5 : vector<8x16xf32>
    %cst_3 = arith.constant dense<0.000000e+00> : vector<8xf32>
    %7 = vector.multi_reduction <add>, %6, %cst_3 [1] : vector<8x16xf32> to vector<8xf32>
    %8 = vector.shape_cast %7 : vector<8xf32> to vector<8x1xf32>
    %9 = math.log %8 : vector<8x1xf32>
    %10 = tpu.iota {dimensions = array<i32: 1>} : vector<8x16xi32>
    %11 = vector.broadcast %1 : vector<8x1xi32> to vector<8x16xi32>
    %12 = arith.cmpi eq, %10, %11 : vector<8x16xi32>
    %cst_4 = arith.constant 0.000000e+00 : f32
    %13 = vector.broadcast %cst_4 : f32 to vector<8x16xf32>
    %14 = arith.select %12, %5, %13 : vector<8x16xi1>, vector<8x16xf32>
    %cst_5 = arith.constant dense<0.000000e+00> : vector<8xf32>
    %15 = vector.multi_reduction <add>, %14, %cst_5 [1] : vector<8x16xf32> to vector<8xf32>
    %16 = vector.shape_cast %15 : vector<8xf32> to vector<8x1xf32>
    %17 = arith.subf %16, %9 : vector<8x1xf32>
    %cst_6 = arith.constant 0.000000e+00 : f32
    %18 = vector.broadcast %cst_6 : f32 to vector<8x1xf32>
    %19 = arith.subf %18, %17 : vector<8x1xf32>
    %cst_7 = arith.constant 0.000000e+00 : f32
    %20 = vector.broadcast %cst_7 : f32 to vector<8x1xf32>
    %21 = arith.subf %20, %19 : vector<8x1xf32>
    %22 = math.exp %21 : vector<8x1xf32>
    %cst_8 = arith.constant 1.000000e+00 : f32
    %23 = vector.broadcast %cst_8 : f32 to vector<8x1xf32>
    %24 = arith.subf %23, %22 : vector<8x1xf32>
    %cst_9 = arith.constant 1.000000e+00 : f32
    %25 = vector.broadcast %cst_9 : f32 to vector<8x1xf32>
    %26 = arith.mulf %25, %24 : vector<8x1xf32>
    %27 = arith.mulf %26, %24 : vector<8x1xf32>
    %28 = arith.mulf %27, %19 : vector<8x1xf32>
    %c8_i32 = arith.constant 8 : i32
    %29 = arith.muli %arg0, %c8_i32 : i32
    %30 = tpu.iota {dimensions = array<i32: 0>} : vector<8x1xi32>
    %31 = vector.broadcast %29 : i32 to vector<8x1xi32>
    %32 = arith.addi %31, %30 : vector<8x1xi32>
    %c8_i32_10 = arith.constant 8 : i32
    %33 = vector.broadcast %c8_i32_10 : i32 to vector<8x1xi32>
    %34 = arith.cmpi slt, %32, %33 : vector<8x1xi32>
    %cst_11 = arith.constant 0.000000e+00 : f32
    %35 = vector.broadcast %cst_11 : f32 to vector<8x1xf32>
    %36 = arith.select %34, %28, %35 : vector<8x1xi1>, vector<8x1xf32>
    %37 = vector.shape_cast %36 : vector<8x1xf32> to vector<1x8x1xf32>
    %cst_12 = arith.constant dense<0.000000e+00> : vector<1xf32>
    %38 = vector.multi_reduction <add>, %37, %cst_12 [1, 2] : vector<1x8x1xf32> to vector<1xf32>
    %39 = vector.shape_cast %38 : vector<1xf32> to vector<1x1x1xf32>
    %40 = vector.extract %39[0, 0, 0] : f32 from vector<1x1x1xf32>
    %c0_13 = arith.constant 0 : index
    %c0_14 = arith.constant 0 : index
    %41 = memref.load %arg3[%c0_13, %c0_14] : memref<1x1xf32, #tpu.memory_space<smem>>
    memref.store %40, %arg3[%c0_13, %c0_14] : memref<1x1xf32, #tpu.memory_space<smem>>
    return
  }
  func.func @transform_0(%arg0: i32) -> (i32, i32) {
    %c0_i32 = arith.constant 0 : i32
    %c0_i32_0 = arith.constant 0 : i32
    return %arg0, %c0_i32 : i32, i32
  }
  func.func @transform_1(%arg0: i32) -> (i32, i32) {
    %c0_i32 = arith.constant 0 : i32
    %c0_i32_0 = arith.constant 0 : i32
    return %arg0, %c0_i32 : i32, i32
  }
  func.func @transform_2(%arg0: i32) -> (i32, i32) {
    %c0_i32 = arith.constant 0 : i32
    %c0_i32_0 = arith.constant 0 : i32
    return %arg0, %c0_i32 : i32, i32
  }
}

</mosaic_0001>

<llo_original>
// kernel: tpu_custom_call.1
$region0: #{tpu_custom_call.1}
  #allocation0 [shape = 'u32[]', space=smem, size = 0x4, offset = 0x4, fixed_abs, tag = 'smem constant byte address 0x4 - core index']
  #allocation1 [shape = 'u32[72,128]{1,0:T(1,128)}', space=vmem, size = 0x9000, scoped, tag = 'internal scratch']
  %s0 = inlined_call_operand.vmem [shape: f32[8,16], index: 0, kind: input, shape index: {}]
  %s1 = inlined_call_operand.vmem [shape: s32[8,1], index: 1, kind: input, shape index: {}]
  %s2 = inlined_call_operand.hbm [shape: f32[1,1], index: 2, kind: output, shape index: {}]
  %s3 = sld [smem:[#allocation0]]
  $region18: #{tpu_custom_call.1} parent=0
    _
  %s5 = ssub.s32 1, %s3
  %s6 = scalar_select 0, %s5, %s3
  $region1: #{tpu_custom_call.1} parent=0
    #allocation2 [shape = 'u8[512]{0}', space=smem, size = 0x200, scoped, tag = 'output window, operand 0, single buffered']
    #allocation3 [shape = 's32[1]{0}', space=sflag, size = 0x4, scoped, tag = 'scoped memory for tpu_custom_call.1']
    %7 = vsyncpa [#allocation3], 0
    // Predicated region
    $region2: #{tpu_custom_call.1} parent=1 // pred_check
      _
    $region3: #{tpu_custom_call.1} parent=1 // pred_check_branch
      %9 = sbr.rel (0) target = $region5
    $region4: #{tpu_custom_call.1} parent=1 // pred_region
      _
    $region5: #{tpu_custom_call.1} parent=1 // pred_fallthru
      _
    // Predicated region
    $region6: #{tpu_custom_call.1} parent=1 // pred_check
      _
    $region7: #{tpu_custom_call.1} parent=1 // pred_check_branch
      %11 = sbr.rel (0) target = $region9
    $region8: #{tpu_custom_call.1} parent=1 // pred_region
      _
    $region9: #{tpu_custom_call.1} parent=1 // pred_fallthru
      _
    %v12 = vld [vmem:[%s0] sm:$0xff]
    %v13 = vld [vmem:[%s1] sm:$0xff]
    %vm14 = vcmask 130048
    %v15 = vsel %vm14, %v12, -inf
    %16 = vmax.xlane.f32.xlu0 %v15
    %v17 = vpop.xlane.xlu0 %16
    %v18 = vsub.f32 %v12, %v17
    %v19 = vmul.f32 %v18, 1.442695
    %v20 = vpow.pop %v19
    %v21 = vsel %vm14, %v20, 0.0
    %22 = vadd.xlane.f32.xlu0 %v21
    %v23 = vpop.xlane.xlu0 %22
    %v24 = vlog2.pop %v23
    %v25 = vmul.f32 %v24, 0.6931472
    %v26 = vlaneseq
    %v27 = vand.u32 %v26, 127
    %28 = vset.pattern.permute.xlu0 0
    %29 = vperm.xlu0 %28, %v13
    %v30 = vpop.permute.xlu0 %29
    %vm31 = vcmp.eq.s32.totalorder %v27, %v30
    %v32 = vsel %vm31, %v18, 0.0
    %v33 = vsel %vm14, %v32, 0.0
    %34 = vadd.xlane.f32.xlu0 %v33
    %v35 = vpop.xlane.xlu0 %34
    %v36 = vsub.f32 %v35, %v25
    %v37 = vsub.f32 0.0, %v36
    %v38 = vsub.f32 0.0, %v37
    %v39 = vmul.f32 %v38, 1.442695
    %v40 = vpow.pop %v39
    %v41 = vsub.f32 1.0, %v40
    %v42 = vmul.f32 %v41, %v41
    %v43 = vmul.f32 %v42, %v37
    %s44 = smul.u32 0, 8
    %v45 = vlaneseq
    %v46 = vshrl.u32 %v45, 7
    %v47 = vstv %s44
    %v48 = vadd.s32 %v47, %v46
    %vm49 = vcmp.lt.s32.totalorder %v48, 8
    %v50 = vsel %vm49, %v43, 0.0
    %vm51 = vcmask 7168
    %v52 = vsel %vm51, %v50, 0.0
    %53 = vadd.xlane.f32.xlu0 %v52
    %v54 = vpop.xlane.xlu0 %53
    %v55 = vrot.slane %v54, 4
    %v56 = vadd.f32 %v54, %v55
    %v57 = vrot.slane %v56, 2
    %v58 = vadd.f32 %v56, %v57
    %v59 = vrot.slane %v58, 1
    %v60 = vadd.f32 %v58, %v59
    %s61 = vtos %v60
    %s62 = scalar_lea.smem [#allocation2], 0
    %63 = sst [smem:[%s62]] %s61
    // Predicated region
    $region10: #{tpu_custom_call.1} parent=1 // pred_check
      _
    $region11: #{tpu_custom_call.1} parent=1 // pred_check_branch
      %65 = sbr.rel (0) target = $region13
    $region12: #{tpu_custom_call.1} parent=1 // pred_region
      %67 = vsyncadd [#allocation3], 0
      %s69 = sshll.u32 %s2, 4
      %s70 = int_to_ptr.hbm [resolvable:$true] %s69
      %72 = dma.smem_to_hbm [#allocation2], 16, %s70, [#allocation3]
    $region13: #{tpu_custom_call.1} parent=1 // pred_fallthru
      _
    // Predicated region
    $region14: #{tpu_custom_call.1} parent=1 // pred_check
      _
    $region15: #{tpu_custom_call.1} parent=1 // pred_check_branch
      %74 = sbr.rel (0) target = $region17
    $region16: #{tpu_custom_call.1} parent=1 // pred_region
      %76 = dma.done [#allocation3], 16
    $region17: #{tpu_custom_call.1} parent=1 // pred_fallthru
      _
    %77 = sfence
    %78 = vsyncpa [#allocation3], 1

</llo_original>
